<compile_context>
chip_gen: v6e
topology: v6e:2x2x1
jax: 0.10.0
libtpu: 0.0.40
codegen_flags: <defaults>
</compile_context>

<pallas_src>
import functools

import jax
import jax.numpy as jnp
from jax.experimental import pallas as pl
from jax.experimental.pallas import tpu as pltpu

EPS = 1e-5                       # torch.nn.LayerNorm default
VMEM_LIMIT = 48 * 1024 * 1024    # stays under v7x's 64 MiB/TC, above the 32 MiB default


def _row_tile(n):
    # Largest row tile (multiple of 8 / full extent) that keeps blocks (8,128)-legal
    # and leaves room for resident weights + double buffers in VMEM.
    return n if n <= 512 else 512


def _itemsize(x):
    return jnp.dtype(x.dtype).itemsize


def _ln_f32(x, gamma, beta):
    # One-pass LayerNorm: single pair of cross-lane reductions (E[x], E[x^2]).
    mean = jnp.mean(x, axis=-1, keepdims=True)
    mean_sq = jnp.mean(x * x, axis=-1, keepdims=True)
    var = jnp.maximum(mean_sq - mean * mean, 0.0)
    inv = jax.lax.rsqrt(var + EPS)
    return (x - mean) * inv * gamma + beta


# ----------------------------- kernels ---------------------------------------


def ln_linear_kernel(x_ref, g_ref, b_ref, w_ref, bias_ref, o_ref):
    """LayerNorm(dim) fused with Linear(dim -> OUT). Used for the qkv projection."""
    x = x_ref[...].astype(jnp.float32)
    y = _ln_f32(x, g_ref[...].astype(jnp.float32), b_ref[...].astype(jnp.float32))
    y = y.astype(w_ref.dtype)          # matmul in input/weight dtype on the MXU
    out = jnp.dot(y, w_ref[...], preferred_element_type=jnp.float32)
    out = out + bias_ref[...].astype(jnp.float32)
    o_ref[...] = out.astype(o_ref.dtype)


def linear_add_kernel(x_ref, w_ref, bias_ref, res_ref, o_ref):
    """to_out projection + bias + residual add."""
    out = jnp.dot(x_ref[...], w_ref[...], preferred_element_type=jnp.float32)
    out = out + bias_ref[...].astype(jnp.float32) + res_ref[...].astype(jnp.float32)
    o_ref[...] = out.astype(o_ref.dtype)


def ln_ff_add_kernel(x_ref, g_ref, b_ref, w1_ref, b1_ref, w2_ref, b2_ref, o_ref):
    """LayerNorm + Linear + GELU + Linear + bias + residual, single store."""
    x = x_ref[...].astype(jnp.float32)
    y = _ln_f32(x, g_ref[...].astype(jnp.float32), b_ref[...].astype(jnp.float32))
    y = y.astype(w1_ref.dtype)
    h = jnp.dot(y, w1_ref[...], preferred_element_type=jnp.float32)
    h = h + b1_ref[...].astype(jnp.float32)
    # TODO(synk): tanh-approximate GELU; torch nn.GELU default is the exact erf form.
    h = 0.5 * h * (1.0 + jnp.tanh(0.7978845608028654 * (h + 0.044715 * h * h * h)))
    h = h.astype(w2_ref.dtype)
    out = jnp.dot(h, w2_ref[...], preferred_element_type=jnp.float32)
    out = out + b2_ref[...].astype(jnp.float32) + x       # residual (x already f32)
    o_ref[...] = out.astype(o_ref.dtype)


def attention_kernel(q_ref, k_ref, v_ref, o_ref, *, scale):
    """Standard multi-head softmax attention for one batch element ('trans' mode)."""
    q = q_ref[0]                                            # (H, S, Dh)
    k = k_ref[0]
    v = v_ref[0]
    s = jnp.einsum('hqd,hkd->hqk', q, k, preferred_element_type=jnp.float32) * scale
    m = jnp.max(s, axis=-1, keepdims=True)
    e = jnp.exp(s - m)
    p = e / jnp.sum(e, axis=-1, keepdims=True)
    out = jnp.einsum('hqk,hkd->hqd', p.astype(v.dtype), v,
                     preferred_element_type=jnp.float32)
    o_ref[0] = out.astype(o_ref.dtype)


# ----------------------------- wrappers ---------------------------------------


def _compiler_params():
    return pltpu.CompilerParams(dimension_semantics=("parallel",),
                                vmem_limit_bytes=VMEM_LIMIT)


def ln_linear(x2, gamma, beta, w, bias):
    N, D = x2.shape
    OUT = w.shape[1]
    TM = _row_tile(N)
    cost = pl.CostEstimate(
        flops=2 * N * D * OUT + 8 * N * D,
        transcendentals=N,
        bytes_accessed=(N * D + N * OUT) * _itemsize(x2) + D * OUT * _itemsize(w))
    return pl.pallas_call(
        ln_linear_kernel,
        out_shape=jax.ShapeDtypeStruct((N, OUT), x2.dtype),
        grid_spec=pltpu.PrefetchScalarGridSpec(
            num_scalar_prefetch=0,
            grid=(pl.cdiv(N, TM),),
            in_specs=[
                pl.BlockSpec((TM, D), lambda i: (i, 0)),
                pl.BlockSpec((1, D), lambda i: (0, 0)),
                pl.BlockSpec((1, D), lambda i: (0, 0)),
                pl.BlockSpec((D, OUT), lambda i: (0, 0)),    # weights resident
                pl.BlockSpec((1, OUT), lambda i: (0, 0)),
            ],
            out_specs=pl.BlockSpec((TM, OUT), lambda i: (i, 0)),
        ),
        compiler_params=_compiler_params(),
        cost_estimate=cost,
    )(x2, gamma.reshape(1, D), beta.reshape(1, D), w, bias.reshape(1, OUT))


def linear_add(x2, w, bias, res):
    N, K = x2.shape
    OUT = w.shape[1]
    TM = _row_tile(N)
    cost = pl.CostEstimate(
        flops=2 * N * K * OUT,
        transcendentals=0,
        bytes_accessed=(N * K + 2 * N * OUT) * _itemsize(x2) + K * OUT * _itemsize(w))
    return pl.pallas_call(
        linear_add_kernel,
        out_shape=jax.ShapeDtypeStruct((N, OUT), res.dtype),
        grid_spec=pltpu.PrefetchScalarGridSpec(
            num_scalar_prefetch=0,
            grid=(pl.cdiv(N, TM),),
            in_specs=[
                pl.BlockSpec((TM, K), lambda i: (i, 0)),
                pl.BlockSpec((K, OUT), lambda i: (0, 0)),
                pl.BlockSpec((1, OUT), lambda i: (0, 0)),
                pl.BlockSpec((TM, OUT), lambda i: (i, 0)),
            ],
            out_specs=pl.BlockSpec((TM, OUT), lambda i: (i, 0)),
        ),
        compiler_params=_compiler_params(),
        cost_estimate=cost,
    )(x2, w, bias.reshape(1, OUT), res)


def ln_ff_add(x2, gamma, beta, w1, b1, w2, b2):
    N, D = x2.shape
    M = w1.shape[1]
    TM = _row_tile(N)
    # TODO(synk): for very large D*M (e.g. D>=2048 f32 on v7x's 64 MiB VMEM) add a
    # K-axis grid with a VMEM f32 accumulator instead of keeping both weights resident.
    cost = pl.CostEstimate(
        flops=4 * N * D * M + 16 * N * D,
        transcendentals=N * (M + 1),
        bytes_accessed=2 * N * D * _itemsize(x2) + 2 * D * M * _itemsize(w1))
    return pl.pallas_call(
        ln_ff_add_kernel,
        out_shape=jax.ShapeDtypeStruct((N, D), x2.dtype),
        grid_spec=pltpu.PrefetchScalarGridSpec(
            num_scalar_prefetch=0,
            grid=(pl.cdiv(N, TM),),
            in_specs=[
                pl.BlockSpec((TM, D), lambda i: (i, 0)),
                pl.BlockSpec((1, D), lambda i: (0, 0)),
                pl.BlockSpec((1, D), lambda i: (0, 0)),
                pl.BlockSpec((D, M), lambda i: (0, 0)),      # W1 resident
                pl.BlockSpec((1, M), lambda i: (0, 0)),
                pl.BlockSpec((M, D), lambda i: (0, 0)),      # W2 resident
                pl.BlockSpec((1, D), lambda i: (0, 0)),
            ],
            out_specs=pl.BlockSpec((TM, D), lambda i: (i, 0)),
        ),
        compiler_params=_compiler_params(),
        cost_estimate=cost,
    )(x2, gamma.reshape(1, D), beta.reshape(1, D), w1, b1.reshape(1, M),
      w2, b2.reshape(1, D))


def attention(q, k, v, scale):
    B, H, S, Dh = q.shape
    cost = pl.CostEstimate(
        flops=4 * B * H * S * S * Dh,
        transcendentals=B * H * S * S,
        bytes_accessed=4 * B * H * S * Dh * _itemsize(q))
    kern = functools.partial(attention_kernel, scale=scale)
    return pl.pallas_call(
        kern,
        out_shape=jax.ShapeDtypeStruct((B, H, S, Dh), q.dtype),
        grid_spec=pltpu.PrefetchScalarGridSpec(
            num_scalar_prefetch=0,
            grid=(B,),
            in_specs=[
                pl.BlockSpec((1, H, S, Dh), lambda b: (b, 0, 0, 0)),
                pl.BlockSpec((1, H, S, Dh), lambda b: (b, 0, 0, 0)),
                pl.BlockSpec((1, H, S, Dh), lambda b: (b, 0, 0, 0)),
            ],
            out_specs=pl.BlockSpec((1, H, S, Dh), lambda b: (b, 0, 0, 0)),
        ),
        compiler_params=_compiler_params(),
        cost_estimate=cost,
    )(q, k, v)


# ----------------------------- transformer ------------------------------------


def transformer_forward(x, layers, heads, dim_head):
    """x: (B, S, D). Returns (depth*B, D), matching torch.cat of x[:, 0, :] per layer."""
    B, S, D = x.shape
    N = B * S
    inner = heads * dim_head
    scale = float(dim_head) ** -0.5
    zeros_qkv = jnp.zeros((3 * inner,), x.dtype)           # to_qkv has bias=False
    cls_tokens = []
    x2 = x.reshape(N, D)
    for p in layers:
        # ---- PreNorm + Attention + residual ----
        qkv = ln_linear(x2, p['ln1_g'], p['ln1_b'], p['w_qkv'], zeros_qkv)
        qkv = qkv.reshape(B, S, 3, heads, dim_head)
        q = jnp.transpose(qkv[:, :, 0], (0, 2, 1, 3))      # (B, H, S, Dh)
        k = jnp.transpose(qkv[:, :, 1], (0, 2, 1, 3))
        v = jnp.transpose(qkv[:, :, 2], (0, 2, 1, 3))
        o = attention(q, k, v, scale)                       # (B, H, S, Dh)
        o = jnp.transpose(o, (0, 2, 1, 3)).reshape(N, inner)
        # to_out (project_out=True when heads*dim_head != dim or heads != 1) + residual
        x2 = linear_add(o, p['w_o'], p['b_o'], x2)
        # ---- PreNorm + FeedForward + residual ----
        x2 = ln_ff_add(x2, p['ln2_g'], p['ln2_b'], p['w1'], p['b1'], p['w2'], p['b2'])
        cls_tokens.append(x2.reshape(B, S, D)[:, 0, :])
    return jnp.concatenate(cls_tokens, axis=0)


# ----------------------------- reference & test --------------------------------


def _layer_norm_ref(x, g, b):
    xf = x.astype(jnp.float32)
    mean = jnp.mean(xf, axis=-1, keepdims=True)
    var = jnp.mean((xf - mean) ** 2, axis=-1, keepdims=True)
    return ((xf - mean) * jax.lax.rsqrt(var + EPS) * g + b).astype(x.dtype)


def transformer_reference(x, layers, heads, dim_head):
    B, S, D = x.shape
    inner = heads * dim_head
    scale = float(dim_head) ** -0.5
    outs = []
    for p in layers:
        y = _layer_norm_ref(x, p['ln1_g'], p['ln1_b'])
        qkv = y @ p['w_qkv']
        q, k, v = jnp.split(qkv, 3, axis=-1)

        def split_heads(t):
            return jnp.transpose(t.reshape(B, S, heads, dim_head), (0, 2, 1, 3))

        q, k, v = split_heads(q), split_heads(k), split_heads(v)
        s = jnp.einsum('bhqd,bhkd->bhqk', q, k) * scale
        a = jax.nn.softmax(s, axis=-1)
        o = jnp.einsum('bhqk,bhkd->bhqd', a, v)
        o = jnp.transpose(o, (0, 2, 1, 3)).reshape(B, S, inner)
        x = o @ p['w_o'] + p['b_o'] + x
        y = _layer_norm_ref(x, p['ln2_g'], p['ln2_b'])
        h = jax.nn.gelu(y @ p['w1'] + p['b1'], approximate=False)  # exact erf GELU
        x = h @ p['w2'] + p['b2'] + x
        outs.append(x[:, 0, :])
    return jnp.concatenate(outs, axis=0)


def init_params(key, depth, dim, heads, dim_head, mlp_dim):
    inner = heads * dim_head
    layers = []
    for _ in range(depth):
        key, *ks = jax.random.split(key, 12)
        layers.append(dict(
            ln1_g=jnp.ones((dim,), jnp.float32)
                  + 0.01 * jax.random.normal(ks[0], (dim,), jnp.float32),
            ln1_b=0.01 * jax.random.normal(ks[1], (dim,), jnp.float32),
            w_qkv=jax.random.normal(ks[2], (dim, 3 * inner), jnp.float32) * (dim ** -0.5),
            w_o=jax.random.normal(ks[3], (inner, dim), jnp.float32) * (inner ** -0.5),
            b_o=0.01 * jax.random.normal(ks[4], (dim,), jnp.float32),
            ln2_g=jnp.ones((dim,), jnp.float32)
                  + 0.01 * jax.random.normal(ks[5], (dim,), jnp.float32),
            ln2_b=0.01 * jax.random.normal(ks[6], (dim,), jnp.float32),
            w1=jax.random.normal(ks[7], (dim, mlp_dim), jnp.float32) * (dim ** -0.5),
            b1=0.01 * jax.random.normal(ks[8], (mlp_dim,), jnp.float32),
            w2=jax.random.normal(ks[9], (mlp_dim, dim), jnp.float32) * (mlp_dim ** -0.5),
            b2=0.01 * jax.random.normal(ks[10], (dim,), jnp.float32),
        ))
    return layers


if __name__ == "__main__":
    key = jax.random.PRNGKey(0)
    B, S, D = 2, 8, 64
    heads, dim_head, mlp_dim, depth = 4, 16, 128, 2

    kx, kp = jax.random.split(key)
    x = jax.random.normal(kx, (B, S, D), dtype=jnp.float32)
    layers = init_params(kp, depth, D, heads, dim_head, mlp_dim)

    out = transformer_forward(x, layers, heads, dim_head)
    out = jax.block_until_ready(out)

    ref = transformer_reference(x, layers, heads, dim_head)
    assert out.shape == (depth * B, D)
    max_err = float(jnp.max(jnp.abs(out - ref)))
    assert jnp.allclose(out, ref, atol=1e-2, rtol=1e-2), max_err
    print("KERNEL_OK")
</pallas_src>

<mosaic_0001>
module attributes {stable_mosaic.version = 11 : i64} {
  func.func @ln_linear_kernel(%arg0: i32, %arg1: memref<16x64xf32, #tpu.memory_space<vmem>>, %arg2: memref<1x64xf32, #tpu.memory_space<vmem>>, %arg3: memref<1x64xf32, #tpu.memory_space<vmem>>, %arg4: memref<64x192xf32, #tpu.memory_space<vmem>>, %arg5: memref<1x192xf32, #tpu.memory_space<vmem>>, %arg6: memref<16x192xf32, #tpu.memory_space<vmem>>) attributes {dimension_semantics = [#tpu.dimension_semantics<parallel>], iteration_bounds = array<i64: 1>, scalar_prefetch = 0 : i64, scratch_operands = 0 : i64, tpu.core_type = #tpu.core_type<tc>, window_params = [{transform_indices = @transform_0, window_bounds = array<i64: 16, 64>}, {pipeline_mode = #tpu.pipeline_mode<synchronous>, transform_indices = @transform_1, window_bounds = array<i64: 1, 64>}, {pipeline_mode = #tpu.pipeline_mode<synchronous>, transform_indices = @transform_2, window_bounds = array<i64: 1, 64>}, {pipeline_mode = #tpu.pipeline_mode<synchronous>, transform_indices = @transform_3, window_bounds = array<i64: 64, 192>}, {pipeline_mode = #tpu.pipeline_mode<synchronous>, transform_indices = @transform_4, window_bounds = array<i64: 1, 192>}, {transform_indices = @transform_5, window_bounds = array<i64: 16, 192>}]} {
    %c0 = arith.constant 0 : index
    %c0_0 = arith.constant 0 : index
    %0 = vector.load %arg1[%c0, %c0_0] : memref<16x64xf32, #tpu.memory_space<vmem>>, vector<16x64xf32>
    %c0_1 = arith.constant 0 : index
    %c0_2 = arith.constant 0 : index
    %1 = vector.load %arg2[%c0_1, %c0_2] : memref<1x64xf32, #tpu.memory_space<vmem>>, vector<1x64xf32>
    %c0_3 = arith.constant 0 : index
    %c0_4 = arith.constant 0 : index
    %2 = vector.load %arg3[%c0_3, %c0_4] : memref<1x64xf32, #tpu.memory_space<vmem>>, vector<1x64xf32>
    %cst = arith.constant dense<0.000000e+00> : vector<16xf32>
    %3 = vector.multi_reduction <add>, %0, %cst [1] : vector<16x64xf32> to vector<16xf32>
    %4 = vector.shape_cast %3 : vector<16xf32> to vector<16x1xf32>
    %cst_5 = arith.constant 6.400000e+01 : f32
    %5 = vector.broadcast %cst_5 : f32 to vector<16x1xf32>
    %6 = arith.divf %4, %5 : vector<16x1xf32>
    %7 = arith.mulf %0, %0 : vector<16x64xf32>
    %cst_6 = arith.constant dense<0.000000e+00> : vector<16xf32>
    %8 = vector.multi_reduction <add>, %7, %cst_6 [1] : vector<16x64xf32> to vector<16xf32>
    %9 = vector.shape_cast %8 : vector<16xf32> to vector<16x1xf32>
    %cst_7 = arith.constant 6.400000e+01 : f32
    %10 = vector.broadcast %cst_7 : f32 to vector<16x1xf32>
    %11 = arith.divf %9, %10 : vector<16x1xf32>
    %12 = arith.mulf %6, %6 : vector<16x1xf32>
    %13 = arith.subf %11, %12 : vector<16x1xf32>
    %cst_8 = arith.constant 0.000000e+00 : f32
    %14 = vector.broadcast %cst_8 : f32 to vector<16x1xf32>
    %15 = arith.maximumf %13, %14 : vector<16x1xf32>
    %cst_9 = arith.constant 9.99999974E-6 : f32
    %16 = vector.broadcast %cst_9 : f32 to vector<16x1xf32>
    %17 = arith.addf %15, %16 : vector<16x1xf32>
    %18 = math.rsqrt %17 : vector<16x1xf32>
    %19 = vector.broadcast %6 : vector<16x1xf32> to vector<16x64xf32>
    %20 = arith.subf %0, %19 : vector<16x64xf32>
    %21 = vector.broadcast %18 : vector<16x1xf32> to vector<16x64xf32>
    %22 = arith.mulf %20, %21 : vector<16x64xf32>
    %23 = vector.broadcast %1 : vector<1x64xf32> to vector<16x64xf32>
    %24 = arith.mulf %22, %23 : vector<16x64xf32>
    %25 = vector.broadcast %2 : vector<1x64xf32> to vector<16x64xf32>
    %26 = arith.addf %24, %25 : vector<16x64xf32>
    %c0_10 = arith.constant 0 : index
    %c0_11 = arith.constant 0 : index
    %27 = vector.load %arg4[%c0_10, %c0_11] : memref<64x192xf32, #tpu.memory_space<vmem>>, vector<64x192xf32>
    %cst_12 = arith.constant dense<0.000000e+00> : vector<16x192xf32>
    %28 = tpu.matmul %26, %27, %cst_12 {dimension_numbers = #tpu.dot_dimension_numbers<[1], [0], [0], [1], [0, 0, 1, 1], [], []>} : vector<16x64xf32>, vector<64x192xf32>, vector<16x192xf32> -> vector<16x192xf32>
    %c0_13 = arith.constant 0 : index
    %c0_14 = arith.constant 0 : index
    %29 = vector.load %arg5[%c0_13, %c0_14] : memref<1x192xf32, #tpu.memory_space<vmem>>, vector<1x192xf32>
    %30 = vector.broadcast %29 : vector<1x192xf32> to vector<16x192xf32>
    %31 = arith.addf %28, %30 : vector<16x192xf32>
    %c0_15 = arith.constant 0 : index
    %c0_16 = arith.constant 0 : index
    %32 = vector.load %arg6[%c0_15, %c0_16] : memref<16x192xf32, #tpu.memory_space<vmem>>, vector<16x192xf32>
    tpu.vector_store %arg6[%c0_15, %c0_16], %31 {strides = array<i32>} : memref<16x192xf32, #tpu.memory_space<vmem>>, vector<16x192xf32>,
    return
  }
  func.func @transform_0(%arg0: i32) -> (i32, i32) {
    %c0_i32 = arith.constant 0 : i32
    %c0_i32_0 = arith.constant 0 : i32
    return %arg0, %c0_i32 : i32, i32
  }
  func.func @transform_1(%arg0: i32) -> (i32, i32) {
    %c0_i32 = arith.constant 0 : i32
    %c0_i32_0 = arith.constant 0 : i32
    %c0_i32_1 = arith.constant 0 : i32
    return %c0_i32, %c0_i32_0 : i32, i32
  }
  func.func @transform_2(%arg0: i32) -> (i32, i32) {
    %c0_i32 = arith.constant 0 : i32
    %c0_i32_0 = arith.constant 0 : i32
    %c0_i32_1 = arith.constant 0 : i32
    return %c0_i32, %c0_i32_0 : i32, i32
  }
  func.func @transform_3(%arg0: i32) -> (i32, i32) {
    %c0_i32 = arith.constant 0 : i32
    %c0_i32_0 = arith.constant 0 : i32
    %c0_i32_1 = arith.constant 0 : i32
    return %c0_i32, %c0_i32_0 : i32, i32
  }
  func.func @transform_4(%arg0: i32) -> (i32, i32) {
    %c0_i32 = arith.constant 0 : i32
    %c0_i32_0 = arith.constant 0 : i32
    %c0_i32_1 = arith.constant 0 : i32
    return %c0_i32, %c0_i32_0 : i32, i32
  }
  func.func @transform_5(%arg0: i32) -> (i32, i32) {
    %c0_i32 = arith.constant 0 : i32
    %c0_i32_0 = arith.constant 0 : i32
    return %arg0, %c0_i32 : i32, i32
  }
}

</mosaic_0001>

<llo_original>
// kernel: tpu_custom_call.1
$region0: #{tpu_custom_call.1}
  #allocation0 [shape = 'u32[]', space=smem, size = 0x4, offset = 0x4, fixed_abs, tag = 'smem constant byte address 0x4 - core index']
  #allocation1 [shape = 'u32[144,128]{1,0:T(1,128)}', space=vmem, size = 0x12000, scoped, tag = 'internal scratch']
  %s0 = inlined_call_operand.hbm [shape: f32[16,64], index: 0, kind: input, shape index: {}]
  %s1 = inlined_call_operand.vmem [shape: f32[1,64], index: 1, kind: input, shape index: {}]
  %s2 = inlined_call_operand.hbm [shape: f32[1,64], index: 2, kind: input, shape index: {}]
  %s3 = inlined_call_operand.hbm [shape: f32[64,192], index: 3, kind: input, shape index: {}]
  %s4 = inlined_call_operand.vmem [shape: f32[1,192], index: 4, kind: input, shape index: {}]
  %s5 = inlined_call_operand.hbm [shape: f32[16,192], index: 5, kind: output, shape index: {}]
  %s6 = sld [smem:[#allocation0]]
  $region42: #{tpu_custom_call.1} parent=0
    _
  %s8 = ssub.s32 1, %s6
  %s9 = scalar_select 0, %s8, %s6
  $region1: #{tpu_custom_call.1} parent=0
    #allocation2 [shape = 'u8[8192]{0}', space=vmem, size = 0x2000, scoped, tag = 'input window, operand 0, single buffered']
    #allocation3 [shape = 's32[1]{0}', space=sflag, size = 0x4, scoped, tag = 'scoped memory for tpu_custom_call.1']
    #allocation4 [shape = 's32[1]{0}', space=sflag, size = 0x4, scoped, tag = 'scoped memory for tpu_custom_call.1']
    #allocation5 [shape = 'u8[512]{0}', space=vmem, size = 0x400, scoped, tag = 'input window, operand 2, single buffered']
    #allocation6 [shape = 's32[1]{0}', space=sflag, size = 0x4, scoped, tag = 'scoped memory for tpu_custom_call.1']
    #allocation7 [shape = 'u8[65536]{0}', space=vmem, size = 0x10000, scoped, tag = 'input window, operand 3, single buffered']
    #allocation8 [shape = 'u8[16384]{0}', space=vmem, size = 0x4000, scoped, tag = 'output window, operand 0, single buffered']
    %10 = vsyncpa [#allocation3], 0
    %11 = vsyncpa [#allocation6], 0
    %12 = vsyncpa [#allocation4], 0
    // Predicated region
    $region2: #{tpu_custom_call.1} parent=1 // pred_check
      _
    $region3: #{tpu_custom_call.1} parent=1 // pred_check_branch
      %14 = sbr.rel (0) target = $region5
    $region4: #{tpu_custom_call.1} parent=1 // pred_region
      %s16 = ssub.s32 256, 256
      %17 = vsyncadd [#allocation3], %s16
      %s18 = sshll.u32 [#allocation2], 4
      %s19 = int_to_ptr.vmem [resolvable:$true] %s18
      %24 = dma.hbm_to_vmem [thread:$0]  %s0, 256, %s19, [#allocation3], 128, 128, 8
    $region5: #{tpu_custom_call.1} parent=1 // pred_fallthru
      _
    // Predicated region
    $region6: #{tpu_custom_call.1} parent=1 // pred_check
      _
    $region7: #{tpu_custom_call.1} parent=1 // pred_check_branch
      %26 = sbr.rel (0) target = $region9
    $region8: #{tpu_custom_call.1} parent=1 // pred_region
      _
    $region9: #{tpu_custom_call.1} parent=1 // pred_fallthru
      _
    // Predicated region
    $region10: #{tpu_custom_call.1} parent=1 // pred_check
      _
    $region11: #{tpu_custom_call.1} parent=1 // pred_check_branch
      %28 = sbr.rel (0) target = $region13
    $region12: #{tpu_custom_call.1} parent=1 // pred_region
      %s30 = ssub.s32 16, 16
      %31 = vsyncadd [#allocation6], %s30
      %s33 = sshll.u32 [#allocation5], 4
      %s34 = int_to_ptr.vmem [resolvable:$true] %s33
      %36 = dma.hbm_to_vmem [thread:$0]  %s2, 16, %s34, [#allocation6]
    $region13: #{tpu_custom_call.1} parent=1 // pred_fallthru
      _
    // Predicated region
    $region14: #{tpu_custom_call.1} parent=1 // pred_check
      _
    $region15: #{tpu_custom_call.1} parent=1 // pred_check_branch
      %38 = sbr.rel (0) target = $region17
    $region16: #{tpu_custom_call.1} parent=1 // pred_region
      %s40 = ssub.s32 2048, 2048
      %41 = vsyncadd [#allocation6], %s40
      %s42 = sshll.u32 [#allocation7], 4
      %s43 = int_to_ptr.vmem [resolvable:$true] %s42
      %48 = dma.hbm_to_vmem [thread:$0]  %s3, 2048, %s43, [#allocation6], 256, 256, 16
    $region17: #{tpu_custom_call.1} parent=1 // pred_fallthru
      _
    // Predicated region
    $region18: #{tpu_custom_call.1} parent=1 // pred_check
      _
    $region19: #{tpu_custom_call.1} parent=1 // pred_check_branch
      %50 = sbr.rel (0) target = $region21
    $region20: #{tpu_custom_call.1} parent=1 // pred_region
      _
    $region21: #{tpu_custom_call.1} parent=1 // pred_fallthru
      _
    // Predicated region
    $region22: #{tpu_custom_call.1} parent=1 // pred_check
      _
    $region23: #{tpu_custom_call.1} parent=1 // pred_check_branch
      %52 = sbr.rel (0) target = $region25
    $region24: #{tpu_custom_call.1} parent=1 // pred_region
      %53 = dma.done [#allocation3], 256
    $region25: #{tpu_custom_call.1} parent=1 // pred_fallthru
      _
    // Predicated region
    $region26: #{tpu_custom_call.1} parent=1 // pred_check
      _
    $region27: #{tpu_custom_call.1} parent=1 // pred_check_branch
      %55 = sbr.rel (0) target = $region29
    $region28: #{tpu_custom_call.1} parent=1 // pred_region
      %56 = dma.done [#allocation6], 16
    $region29: #{tpu_custom_call.1} parent=1 // pred_fallthru
      _
    // Predicated region
    $region30: #{tpu_custom_call.1} parent=1 // pred_check
      _
    $region31: #{tpu_custom_call.1} parent=1 // pred_check_branch
      %58 = sbr.rel (0) target = $region33
    $region32: #{tpu_custom_call.1} parent=1 // pred_region
      %59 = dma.done [#allocation6], 2048
    $region33: #{tpu_custom_call.1} parent=1 // pred_fallthru
      _
    %v60 = vld [vmem:[#allocation2] sm:$0xff]
    %v61 = vld [vmem:[#allocation2 + $0x8] sm:$0xff]
    %v62 = vld [vmem:[%s1] sm:$0x1]
    %v63 = vld [vmem:[#allocation5] sm:$0x1]
    %vm64 = vcmask 523264
    %v65 = vsel %vm64, %v60, 0.0
    %66 = vadd.xlane.f32.xlu0 %v65
    %v67 = vpop.xlane.xlu0 %66
    %v68 = vsel %vm64, %v61, 0.0
    %69 = vadd.xlane.f32.xlu0 %v68
    %v70 = vpop.xlane.xlu0 %69
    %v71 = vrcp.pop 64.0
    %v72 = vmul.f32 %v67, %v71
    %v73 = vmul.f32 %v70, %v71
    %v74 = vmul.f32 %v60, %v60
    %v75 = vmul.f32 %v61, %v61
    %v76 = vsel %vm64, %v74, 0.0
    %77 = vadd.xlane.f32.xlu0 %v76
    %v78 = vpop.xlane.xlu0 %77
    %v79 = vsel %vm64, %v75, 0.0
    %80 = vadd.xlane.f32.xlu0 %v79
    %v81 = vpop.xlane.xlu0 %80
    %v82 = vmul.f32 %v78, %v71
    %v83 = vmul.f32 %v81, %v71
    %v84 = vmul.f32 %v72, %v72
    %v85 = vmul.f32 %v73, %v73
    %v86 = vsub.f32 %v82, %v84
    %v87 = vsub.f32 %v83, %v85
    %v88 = vmax.f32 %v86, 0.0
    %v89 = vmax.f32 %v87, 0.0
    %v90 = vadd.f32 %v88, 1e-05
    %v91 = vadd.f32 %v89, 1e-05
    %v92 = vrsqrt.pop %v90
    %v93 = vrsqrt.pop %v91
    %v94 = vsub.f32 %v60, %v72
    %v95 = vsub.f32 %v61, %v73
    %v96 = vmul.f32 %v94, %v92
    %v97 = vmul.f32 %v95, %v93
    %v99 = vlaneseq
    %v100 = vshrl.u32 %v99, 7
    %v101 = vsub.s32 0, %v100
    %v102 = vrot.slane %v62, %v101
    %v104 = vmul.f32 %v96, %v102
    %v105 = vmul.f32 %v97, %v102
    %v107 = vlaneseq
    %v108 = vshrl.u32 %v107, 7
    %v109 = vsub.s32 0, %v108
    %v110 = vrot.slane %v63, %v109
    %v112 = vadd.f32 %v104, %v110
    %v113 = vadd.f32 %v105, %v110
    %v114 = vld [vmem:[#allocation7] sm:$0xff]
    %v115 = vld [vmem:[#allocation7 + $0x8] sm:$0xff]
    %v116 = vld [vmem:[#allocation7 + $0x10] sm:$0xff]
    %v117 = vld [vmem:[#allocation7 + $0x18] sm:$0xff]
    %v118 = vld [vmem:[#allocation7 + $0x20] sm:$0xff]
    %v119 = vld [vmem:[#allocation7 + $0x28] sm:$0xff]
    %v120 = vld [vmem:[#allocation7 + $0x30] sm:$0xff]
    %v121 = vld [vmem:[#allocation7 + $0x38] sm:$0xff]
    %v122 = vld [vmem:[#allocation7 + $0x40] sm:$0xff]
    %v123 = vld [vmem:[#allocation7 + $0x48] sm:$0xff]
    %v124 = vld [vmem:[#allocation7 + $0x50] sm:$0xff]
    %v125 = vld [vmem:[#allocation7 + $0x58] sm:$0xff]
    %v126 = vld [vmem:[#allocation7 + $0x60] sm:$0xff]
    %v127 = vld [vmem:[#allocation7 + $0x68] sm:$0xff]
    %v128 = vld [vmem:[#allocation7 + $0x70] sm:$0xff]
    %v129 = vld [vmem:[#allocation7 + $0x78] sm:$0xff]
    %v130 = vld [vmem:[%s4] sm:$0x3]
    %v132 = vlaneseq
    %v133 = vshrl.u32 %v132, 7
    %v134 = vsub.s32 0, %v133
    %v135 = vrot.slane %v130, %v134
    %v136 = vlaneseq
    %v137 = vshrl.u32 %v136, 7
    %v138 = vsub.s32 1, %v137
    %v139 = vrot.slane %v130, %v138
    %v143 = vsel %vm64, %v112, 0
    %v146 = vsel %vm64, %v113, 0
    %148 = vmatprep.subr.mxu0 0.0
    %149 = vmatpush1.msra.mxu0 0.0
    %150 = vmatprep.subr.mxu0 0.0
    %151 = vmatpush1.msra.mxu0 0.0
    %152 = vmatprep.subr.mxu0 0.0
    %153 = vmatpush1.msra.mxu0 0.0
    %154 = vmatprep.subr.mxu0 0.0
    %155 = vmatpush1.msra.mxu0 0.0
    %156 = vmatprep.subr.mxu0 0.0
    %157 = vmatpush1.msra.mxu0 0.0
    %158 = vmatprep.subr.mxu0 0.0
    %159 = vmatpush1.msra.mxu0 0.0
    %160 = vmatprep.subr.mxu0 0.0
    %161 = vmatpush1.msra.mxu0 0.0
    %162 = vmatprep.subr.mxu0 0.0
    %163 = vmatpush1.msra.mxu0 0.0
    %164 = vmatprep.subr.mxu0 %v129
    %165 = vmatpush1.msra.mxu0 %v128
    %166 = vmatprep.subr.mxu0 %v127
    %167 = vmatpush1.msra.mxu0 %v126
    %168 = vmatprep.subr.mxu0 %v125
    %169 = vmatpush1.msra.mxu0 %v124
    %170 = vmatprep.subr.mxu0 %v123
    %171 = vmatpush1.msra.mxu0 %v122
    %172 = vmatprep.subr.mxu0 %v121
    %173 = vmatpush1.msra.mxu0 %v120
    %174 = vmatprep.subr.mxu0 %v119
    %175 = vmatpush1.msra.mxu0 %v118
    %176 = vmatprep.subr.mxu0 %v117
    %177 = vmatpush1.msra.mxu0 %v116
    %178 = vmatprep.subr.mxu0 %v115
    %179 = vmatpush1.msra.mxu0 %v114
    %180 = vmatprep.subr.mxu0 0.0
    %181 = vmatpush2.msra.mxu0 0.0
    %182 = vmatprep.subr.mxu0 0.0
    %183 = vmatpush2.msra.mxu0 0.0
    %184 = vmatprep.subr.mxu0 0.0
    %185 = vmatpush2.msra.mxu0 0.0
    %186 = vmatprep.subr.mxu0 0.0
    %187 = vmatpush2.msra.mxu0 0.0
    %188 = vmatprep.subr.mxu0 0.0
    %189 = vmatpush2.msra.mxu0 0.0
    %190 = vmatprep.subr.mxu0 0.0
    %191 = vmatpush2.msra.mxu0 0.0
    %192 = vmatprep.subr.mxu0 0.0
    %193 = vmatpush2.msra.mxu0 0.0
    %194 = vmatprep.subr.mxu0 0.0
    %195 = vmatpush2.msra.mxu0 0.0
    %196 = vmatprep.subr.mxu0 0.0
    %197 = vmatpush2.msra.mxu0 0.0
    %198 = vmatprep.subr.mxu0 0.0
    %199 = vmatpush2.msra.mxu0 0.0
    %200 = vmatprep.subr.mxu0 0.0
    %201 = vmatpush2.msra.mxu0 0.0
    %202 = vmatprep.subr.mxu0 0.0
    %203 = vmatpush2.msra.mxu0 0.0
    %204 = vmatprep.subr.mxu0 0.0
    %205 = vmatpush2.msra.mxu0 0.0
    %206 = vmatprep.subr.mxu0 0.0
    %207 = vmatpush2.msra.mxu0 0.0
    %208 = vmatprep.subr.mxu0 0.0
    %209 = vmatpush2.msra.mxu0 0.0
    %210 = vmatprep.subr.mxu0 0.0
    %211 = vmatpush2.msra.mxu0 0.0
    %212 = vmatprep.mubr.f32.mxu0 0.0
    %213 = vmatmul.mubr.f32.gmra.mxu0 %v143
    %v214 = vpop.f32.mrf.mxu0
    %v215 = vadd.f32 %v135, %v214
    %v216 = vpop.f32.mrf.mxu0
    %v217 = vadd.f32 %v139, %v216
    %218 = vmatprep.mubr.f32.mxu0 0.0
    %219 = vmatmul.mubr.f32.gmra.mxu0 %v146
    %v220 = vpop.f32.mrf.mxu0
    %v221 = vadd.f32 %v135, %v220
    %v222 = vpop.f32.mrf.mxu0
    %v223 = vadd.f32 %v139, %v222
    %224 = vdwg.mxu0
    %225 = vst [vmem:[#allocation8] sm:$0xff] %v215
    %226 = vst.msk [vmem:[#allocation8 + $0x8] sm:$0xff] %vm64, %v217
    %227 = vst [vmem:[#allocation8 + $0x10] sm:$0xff] %v221
    %228 = vst.msk [vmem:[#allocation8 + $0x18] sm:$0xff] %vm64, %v223
    // Predicated region
    $region34: #{tpu_custom_call.1} parent=1 // pred_check
      _
    $region35: #{tpu_custom_call.1} parent=1 // pred_check_branch
      %230 = sbr.rel (0) target = $region37
    $region36: #{tpu_custom_call.1} parent=1 // pred_region
      %s232 = ssub.s32 512, 512
      %233 = vsyncadd [#allocation4], %s232
      %s234 = sshll.u32 [#allocation8], 4
      %s235 = int_to_ptr.vmem [resolvable:$true] %s234
      %240 = dma.vmem_to_hbm [thread:$0]  %s235, 512, %s5, [#allocation4], 256, 256, 16
    $region37: #{tpu_custom_call.1} parent=1 // pred_fallthru
      _
    // Predicated region
    $region38: #{tpu_custom_call.1} parent=1 // pred_check
      _
    $region39: #{tpu_custom_call.1} parent=1 // pred_check_branch
      %242 = sbr.rel (0) target = $region41
    $region40: #{tpu_custom_call.1} parent=1 // pred_region
      %243 = dma.done [#allocation4], 512
    $region41: #{tpu_custom_call.1} parent=1 // pred_fallthru
      _
    %244 = vsyncpa [#allocation3], 1
    %245 = vsyncpa [#allocation6], 1
    %246 = vsyncpa [#allocation4], 1

</llo_original>
